<compile_context>
chip_gen: v7x
topology: tpu7x:2x2x1
jax: 0.10.0
libtpu: 0.0.40
codegen_flags: <defaults>
</compile_context>

<pallas_src>
import jax
import jax.numpy as jnp
from jax import lax
from jax.experimental import pallas as pl
from jax.experimental.pallas import tpu as pltpu


def _round_up(a: int, b: int) -> int:
    return ((a + b - 1) // b) * b


def _cdiv(a: int, b: int) -> int:
    return (a + b - 1) // b


def _linear_kernel(x_ref, w_ref, b_ref, o_ref):
    # x_ref: (tm, tk) bf16  — activations tile
    # w_ref: (tn, tk) bf16  — weight tile, PyTorch (C, D) layout
    # b_ref: (1,  tn) f32   — bias tile (lane-dense)
    # o_ref: (tm, tn) f32   — output tile; doubles as the K accumulator
    k = pl.program_id(2)

    @pl.when(k == 0)
    def _():
        # Seed the resident accumulator with the bias — removes the finalize
        # add and the separate zero fill.
        o_ref[...] = jnp.broadcast_to(b_ref[...], o_ref.shape)

    # Contract the last dim of x with the last dim of w (x @ w.T) on the MXU,
    # accumulating in f32 directly into the resident output block.
    # TODO(synk): verify in the Mosaic bundle dump that the lane-contracted
    # RHS lowers to a native transposed matmul (no per-tile vxpose) on v5e; if
    # not, pre-transpose W once to (D, C) in the wrapper.
    o_ref[...] += lax.dot_general(
        x_ref[...], w_ref[...],
        dimension_numbers=(((1,), (1,)), ((), ())),
        preferred_element_type=jnp.float32,
    )


_MAX_TM = 512    # batch rows per block
_MAX_TN = 1024   # classes per block
_MAX_TK = 2048   # reduction elements per block (bf16)


def _choose_tiles(B: int, D: int, C: int):
    # --- K (reduction) dim: prefer the full extent — bypasses the 128 rule,
    # no padding, single K step for typical classifier-head feature dims.
    if D <= _MAX_TK:
        tk, Kp = D, D
    else:
        Kp = _round_up(D, 128)
        tk = 128
        for cand in range(_MAX_TK, 127, -128):
            if Kp % cand == 0:
                tk = cand
                break

    # --- N (classes) dim: no padding when C fits in one block; otherwise the
    # largest divisor of C that is a 256- (then 128-) multiple; pad only as a
    # last resort.
    if C <= _MAX_TN:
        tn, Np = C, C
    else:
        tn = 0
        for step in (256, 128):
            for cand in range((_MAX_TN // step) * step, step - 1, -step):
                if C % cand == 0:
                    tn = cand
                    break
            if tn:
                break
        if tn:
            Np = C
        else:
            tn = 512
            Np = _round_up(C, tn)

    # --- M (batch) dim: pick tm so per-block padding stays < 8 rows.
    n_m = max(1, _cdiv(B, _MAX_TM))
    tm = _round_up(_cdiv(B, n_m), 8)
    Mp = tm * n_m

    # --- v7x megacore: guarantee >= 2 parallel blocks when the grid would
    # otherwise collapse to a single (M, N) block (no effect on v5e/v6e).
    if Mp // tm == 1 and Np // tn == 1 and B >= 16:
        tm = _round_up(_cdiv(B, 2), 8)
        Mp = 2 * tm

    return tm, tn, tk, Mp, Np, Kp


def classifier_forward(x, weight, bias):
    """y = x @ weight.T + bias   (PyTorch nn.Linear forward)."""
    B, D = x.shape
    C, D2 = weight.shape
    assert D == D2, "weight feature dim must match input feature dim"
    assert bias.shape == (C,)

    tm, tn, tk, Mp, Np, Kp = _choose_tiles(B, D, C)

    # bf16 operands, f32 accumulation in-kernel, f32 output.
    x_c = x.astype(jnp.bfloat16)
    w_c = weight.astype(jnp.bfloat16)
    b_c = bias.astype(jnp.float32)

    # Pad only when the chosen tiles genuinely require it (common path: no-op).
    if (Mp, Kp) != (B, D):
        x_c = jnp.pad(x_c, ((0, Mp - B), (0, Kp - D)))
    if (Np, Kp) != (C, D):
        w_c = jnp.pad(w_c, ((0, Np - C), (0, Kp - D)))
    if Np != C:
        b_c = jnp.pad(b_c, (0, Np - C))
    b2d = b_c.reshape(1, Np)

    grid = (Mp // tm, Np // tn, Kp // tk)
    n_weight_tiles = grid[1] * grid[2]

    w_index_map = lambda i, j, k: (j, k)
    w_spec = pl.BlockSpec((tn, tk), w_index_map)
    if n_weight_tiles >= 3:
        # Deeper buffering on the streamed weight in the weight-HBM-bound
        # (small batch, many weight tiles) regime.
        try:
            w_spec = pl.BlockSpec((tn, tk), w_index_map,
                                  pipeline_mode=pl.Buffered(3))
        except (TypeError, AttributeError):
            pass  # older API: keep default double-buffering

    cost = pl.CostEstimate(
        flops=2 * B * D * C,
        bytes_accessed=(x_c.size * x_c.dtype.itemsize
                        + w_c.size * w_c.dtype.itemsize
                        + b2d.size * b2d.dtype.itemsize
                        + Mp * Np * 4),
        transcendentals=0,
    )

    out_padded = pl.pallas_call(
        _linear_kernel,
        out_shape=jax.ShapeDtypeStruct((Mp, Np), jnp.float32),
        grid_spec=pltpu.PrefetchScalarGridSpec(
            num_scalar_prefetch=0,
            grid=grid,
            in_specs=[
                # activations: stream over M and K
                pl.BlockSpec((tm, tk), lambda i, j, k: (i, k)),
                # weight in PyTorch (C, D) layout: stream over N and K
                w_spec,
                # bias: lane-dense (1, tn), only depends on N
                pl.BlockSpec((1, tn), lambda i, j, k: (0, j)),
            ],
            out_specs=pl.BlockSpec((tm, tn), lambda i, j, k: (i, j)),
        ),
        compiler_params=pltpu.CompilerParams(
            dimension_semantics=("parallel", "parallel", "arbitrary"),
            # Safe on v7x's 64 MiB physical VMEM; ample headroom on v5e/v6e.
            vmem_limit_bytes=48 * 1024 * 1024,
        ),
        cost_estimate=cost,
    )(x_c, w_c, b2d)

    out = out_padded
    if (Mp, Np) != (B, C):
        out = out[:B, :C]
    return out.astype(x.dtype)


if __name__ == "__main__":
    key = jax.random.PRNGKey(0)

    # --- Small classifier-head shapes consistent with the module.
    batch, input_dim, num_classes = 8, 32, 8
    kx, kw, kb = jax.random.split(key, 3)
    x = jax.random.normal(kx, (batch, input_dim), dtype=jnp.float32)
    weight = jax.random.normal(kw, (num_classes, input_dim), dtype=jnp.float32) * 0.1
    bias = jax.random.normal(kb, (num_classes,), dtype=jnp.float32) * 0.1

    y = classifier_forward(x, weight, bias)
    jax.block_until_ready(y)
    y_ref = x @ weight.T + bias
    assert y.shape == y_ref.shape
    # bf16 operands (f32 accumulation) -> loosened tolerance vs the f32 ref.
    assert jnp.allclose(y, y_ref, atol=2e-2, rtol=2e-2), "small-shape mismatch"

    # --- Larger multi-tile shape: exercises the 2-way parallel M split
    # (v7x megacore), padding-free N=384, and full-extent K.
    kx2, kw2, kb2 = jax.random.split(jax.random.PRNGKey(1), 3)
    B2, D2, C2 = 512, 1024, 384
    x2 = jax.random.normal(kx2, (B2, D2), dtype=jnp.float32)
    w2 = jax.random.normal(kw2, (C2, D2), dtype=jnp.float32) * 0.05
    b2 = jax.random.normal(kb2, (C2,), dtype=jnp.float32) * 0.05
    y2 = classifier_forward(x2, w2, b2)
    jax.block_until_ready(y2)
    y2_ref = x2 @ w2.T + b2
    assert jnp.allclose(y2, y2_ref, atol=6e-2, rtol=6e-2), "large-shape mismatch"

    # --- Odd, non-aligned shape: exercises the M-padding + output-slice path.
    kx3, kw3, kb3 = jax.random.split(jax.random.PRNGKey(2), 3)
    B3, D3, C3 = 36, 40, 12
    x3 = jax.random.normal(kx3, (B3, D3), dtype=jnp.float32)
    w3 = jax.random.normal(kw3, (C3, D3), dtype=jnp.float32) * 0.1
    b3 = jax.random.normal(kb3, (C3,), dtype=jnp.float32) * 0.1
    y3 = classifier_forward(x3, w3, b3)
    jax.block_until_ready(y3)
    y3_ref = x3 @ w3.T + b3
    assert jnp.allclose(y3, y3_ref, atol=2e-2, rtol=2e-2), "odd-shape mismatch"

    print("KERNEL_OK")
</pallas_src>

<mosaic_0001>
module attributes {stable_mosaic.version = 11 : i64} {
  func.func @_linear_kernel(%arg0: i32, %arg1: i32, %arg2: i32, %arg3: memref<8x32xbf16, #tpu.memory_space<vmem>>, %arg4: memref<8x32xbf16, #tpu.memory_space<vmem>>, %arg5: memref<1x8xf32, #tpu.memory_space<vmem>>, %arg6: memref<8x8xf32, #tpu.memory_space<vmem>>) attributes {dimension_semantics = [#tpu.dimension_semantics<parallel>, #tpu.dimension_semantics<parallel>, #tpu.dimension_semantics<arbitrary>], iteration_bounds = array<i64: 1, 1, 1>, scalar_prefetch = 0 : i64, scratch_operands = 0 : i64, tpu.core_type = #tpu.core_type<tc>, window_params = [{transform_indices = @transform_0, window_bounds = array<i64: 8, 32>}, {transform_indices = @transform_1, window_bounds = array<i64: 8, 32>}, {transform_indices = @transform_2, window_bounds = array<i64: 1, 8>}, {transform_indices = @transform_3, window_bounds = array<i64: 8, 8>}]} {
    %c0_i32 = arith.constant 0 : i32
    %0 = arith.cmpi eq, %arg2, %c0_i32 : i32
    %1 = arith.extui %0 : i1 to i32
    %c0_i32_0 = arith.constant 0 : i32
    %2 = arith.cmpi ne, %1, %c0_i32_0 : i32
    scf.if %2 {
      %c0_8 = arith.constant 0 : index
      %c0_9 = arith.constant 0 : index
      %9 = vector.load %arg5[%c0_8, %c0_9] : memref<1x8xf32, #tpu.memory_space<vmem>>, vector<1x8xf32>
      %10 = vector.shape_cast %9 : vector<1x8xf32> to vector<1x8xf32>
      %11 = vector.broadcast %10 : vector<1x8xf32> to vector<8x8xf32>
      %c0_10 = arith.constant 0 : index
      %c0_11 = arith.constant 0 : index
      %12 = vector.load %arg6[%c0_10, %c0_11] : memref<8x8xf32, #tpu.memory_space<vmem>>, vector<8x8xf32>
      tpu.vector_store %arg6[%c0_10, %c0_11], %11 {strides = array<i32>} : memref<8x8xf32, #tpu.memory_space<vmem>>, vector<8x8xf32>,
    } else {
    }
    %c0 = arith.constant 0 : index
    %c0_1 = arith.constant 0 : index
    %3 = vector.load %arg6[%c0, %c0_1] : memref<8x8xf32, #tpu.memory_space<vmem>>, vector<8x8xf32>
    %c0_2 = arith.constant 0 : index
    %c0_3 = arith.constant 0 : index
    %4 = vector.load %arg3[%c0_2, %c0_3] : memref<8x32xbf16, #tpu.memory_space<vmem>>, vector<8x32xbf16>
    %c0_4 = arith.constant 0 : index
    %c0_5 = arith.constant 0 : index
    %5 = vector.load %arg4[%c0_4, %c0_5] : memref<8x32xbf16, #tpu.memory_space<vmem>>, vector<8x32xbf16>
    %cst = arith.constant dense<0.000000e+00> : vector<8x8xf32>
    %6 = tpu.matmul %4, %5, %cst {dimension_numbers = #tpu.dot_dimension_numbers<[1], [1], [0], [0], [0, 0, 1, 0], [], []>} : vector<8x32xbf16>, vector<8x32xbf16>, vector<8x8xf32> -> vector<8x8xf32>
    %7 = arith.addf %3, %6 : vector<8x8xf32>
    %c0_6 = arith.constant 0 : index
    %c0_7 = arith.constant 0 : index
    %8 = vector.load %arg6[%c0_6, %c0_7] : memref<8x8xf32, #tpu.memory_space<vmem>>, vector<8x8xf32>
    tpu.vector_store %arg6[%c0_6, %c0_7], %7 {strides = array<i32>} : memref<8x8xf32, #tpu.memory_space<vmem>>, vector<8x8xf32>,
    return
  }
  func.func @transform_0(%arg0: i32, %arg1: i32, %arg2: i32) -> (i32, i32) {
    %c0_i32 = arith.constant 0 : i32
    return %arg0, %arg2 : i32, i32
  }
  func.func @transform_1(%arg0: i32, %arg1: i32, %arg2: i32) -> (i32, i32) {
    %c0_i32 = arith.constant 0 : i32
    return %arg1, %arg2 : i32, i32
  }
  func.func @transform_2(%arg0: i32, %arg1: i32, %arg2: i32) -> (i32, i32) {
    %c0_i32 = arith.constant 0 : i32
    %c0_i32_0 = arith.constant 0 : i32
    return %c0_i32, %arg1 : i32, i32
  }
  func.func @transform_3(%arg0: i32, %arg1: i32, %arg2: i32) -> (i32, i32) {
    %c0_i32 = arith.constant 0 : i32
    return %arg0, %arg1 : i32, i32
  }
}

</mosaic_0001>

<llo_original>
// kernel: tpu_custom_call.1
$region0: #{tpu_custom_call.1}
  #allocation0 [shape = 'u32[]', space=smem, size = 0x4, offset = 0x4, fixed_abs, tag = 'smem constant byte address 0x4 - core index']
  #allocation1 [shape = 'u32[144,128]{1,0:T(1,128)}', space=vmem, size = 0x12000, scoped, tag = 'internal scratch']
  %s0 = inlined_call_operand.hbm [shape: bf16[8,32], index: 0, kind: input, shape index: {}]
  %s1 = inlined_call_operand.hbm [shape: bf16[8,32], index: 1, kind: input, shape index: {}]
  %s2 = inlined_call_operand.vmem [shape: f32[1,8], index: 2, kind: input, shape index: {}]
  %s3 = inlined_call_operand.hbm [shape: f32[8,8], index: 3, kind: output, shape index: {}]
  %s4 = sld [smem:[#allocation0]]
  $region34: #{tpu_custom_call.1} parent=0
    _
  %s6 = ssub.s32 1, %s4
  %s7 = scalar_select 0, %s6, %s4
  $region1: #{tpu_custom_call.1} parent=0
    #allocation2 [shape = 'u8[2048]{0}', space=vmem, size = 0x800, scoped, tag = 'input window, operand 0, single buffered']
    #allocation3 [shape = 's32[1]{0}', space=sflag, size = 0x4, scoped, tag = 'scoped memory for tpu_custom_call.1']
    #allocation4 [shape = 's32[1]{0}', space=sflag, size = 0x4, scoped, tag = 'scoped memory for tpu_custom_call.1']
    #allocation5 [shape = 'u8[2048]{0}', space=vmem, size = 0x800, scoped, tag = 'input window, operand 1, single buffered']
    #allocation6 [shape = 's32[1]{0}', space=sflag, size = 0x4, scoped, tag = 'scoped memory for tpu_custom_call.1']
    #allocation7 [shape = 'u8[4096]{0}', space=vmem, size = 0x1000, scoped, tag = 'output window, operand 0, single buffered']
    %8 = vsyncpa [#allocation3], 0
    %9 = vsyncpa [#allocation6], 0
    %10 = vsyncpa [#allocation4], 0
    // Predicated region
    $region2: #{tpu_custom_call.1} parent=1 // pred_check
      _
    $region3: #{tpu_custom_call.1} parent=1 // pred_check_branch
      %12 = sbr.rel (0) target = $region5
    $region4: #{tpu_custom_call.1} parent=1 // pred_region
      %s14 = ssub.s32 64, 64
      %15 = vsyncadd [#allocation3], %s14
      %s17 = sshll.u32 [#allocation2], 4
      %s18 = int_to_ptr.vmem [resolvable:$true] %s17
      %20 = dma.hbm_to_vmem [thread:$0]  %s0, 64, %s18, [#allocation3]
    $region5: #{tpu_custom_call.1} parent=1 // pred_fallthru
      _
    // Predicated region
    $region6: #{tpu_custom_call.1} parent=1 // pred_check
      _
    $region7: #{tpu_custom_call.1} parent=1 // pred_check_branch
      %22 = sbr.rel (0) target = $region9
    $region8: #{tpu_custom_call.1} parent=1 // pred_region
      %s24 = ssub.s32 64, 64
      %25 = vsyncadd [#allocation6], %s24
      %s27 = sshll.u32 [#allocation5], 4
      %s28 = int_to_ptr.vmem [resolvable:$true] %s27
      %30 = dma.hbm_to_vmem [thread:$0]  %s1, 64, %s28, [#allocation6]
    $region9: #{tpu_custom_call.1} parent=1 // pred_fallthru
      _
    // Predicated region
    $region10: #{tpu_custom_call.1} parent=1 // pred_check
      _
    $region11: #{tpu_custom_call.1} parent=1 // pred_check_branch
      %32 = sbr.rel (0) target = $region13
    $region12: #{tpu_custom_call.1} parent=1 // pred_region
      _
    $region13: #{tpu_custom_call.1} parent=1 // pred_fallthru
      _
    // Predicated region
    $region14: #{tpu_custom_call.1} parent=1 // pred_check
      _
    $region15: #{tpu_custom_call.1} parent=1 // pred_check_branch
      %34 = sbr.rel (0) target = $region17
    $region16: #{tpu_custom_call.1} parent=1 // pred_region
      %35 = dma.done [#allocation3], 64
    $region17: #{tpu_custom_call.1} parent=1 // pred_fallthru
      _
    // Predicated region
    $region18: #{tpu_custom_call.1} parent=1 // pred_check
      _
    $region19: #{tpu_custom_call.1} parent=1 // pred_check_branch
      %37 = sbr.rel (0) target = $region21
    $region20: #{tpu_custom_call.1} parent=1 // pred_region
      %38 = dma.done [#allocation6], 64
    $region21: #{tpu_custom_call.1} parent=1 // pred_fallthru
      _
    %p40 = scmp.eq.s32.totalorder 0, 0
    // Predicated region
    $region22: #{tpu_custom_call.1} parent=1 // pred_check
      %p41 = pneg %p40
    $region23: #{tpu_custom_call.1} parent=1 // pred_check_branch
      %43 = sbr.rel (%p41) target = $region25
    $region24: #{tpu_custom_call.1} parent=1 // pred_region
      %v44 = vld [vmem:[%s2] sm:$0x1]
      %v46 = vlaneseq
      %v47 = vshrl.u32 %v46, 7
      %v48 = vsub.s32 0, %v47
      %v49 = vrot.slane %v44, %v48
      %vm51 = vcmask 64512
      %52 = vst.msk [vmem:[#allocation7] sm:$0xff] %vm51, %v49
    $region25: #{tpu_custom_call.1} parent=1 // pred_fallthru
      _
    %v53 = vld [vmem:[#allocation7] sm:$0xff]
    %v54 = vld [vmem:[#allocation2] sm:$0xf]
    %v55 = vld [vmem:[#allocation5] sm:$0xf]
    %vm56 = vcmask 261120
    %v58 = vsel %vm56, %v54, 0
    %v61 = vsel %vm56, %v55, 0
    %63 = vmatprep.subr.bf16.mxu0 0
    %64 = vmatpush1.bf16.xpose.msra.mxu0 %v61
    %65 = vmatprep.subr.bf16.mxu0 0
    %66 = vmatpush1.bf16.xpose.msra.mxu0 0
    %67 = vmatprep.subr.bf16.mxu0 0
    %68 = vmatpush1.bf16.xpose.msra.mxu0 0
    %69 = vmatprep.subr.bf16.mxu0 0
    %70 = vmatpush1.bf16.xpose.msra.mxu0 0
    %71 = vmatprep.subr.bf16.mxu0 0
    %72 = vmatpush1.bf16.xpose.msra.mxu0 0
    %73 = vmatprep.subr.bf16.mxu0 0
    %74 = vmatpush1.bf16.xpose.msra.mxu0 0
    %75 = vmatprep.subr.bf16.mxu0 0
    %76 = vmatpush1.bf16.xpose.msra.mxu0 0
    %77 = vmatprep.subr.bf16.mxu0 0
    %78 = vmatpush1.bf16.xpose.msra.mxu0 0
    %79 = vmatprep.subr.bf16.mxu0 0
    %80 = vmatpush1.bf16.xpose.msra.mxu0 0
    %81 = vmatprep.subr.bf16.mxu0 0
    %82 = vmatpush1.bf16.xpose.msra.mxu0 0
    %83 = vmatprep.subr.bf16.mxu0 0
    %84 = vmatpush1.bf16.xpose.msra.mxu0 0
    %85 = vmatprep.subr.bf16.mxu0 0
    %86 = vmatpush1.bf16.xpose.msra.mxu0 0
    %87 = vmatprep.subr.bf16.mxu0 0
    %88 = vmatpush1.bf16.xpose.msra.mxu0 0
    %89 = vmatprep.subr.bf16.mxu0 0
    %90 = vmatpush1.bf16.xpose.msra.mxu0 0
    %91 = vmatprep.subr.bf16.mxu0 0
    %92 = vmatpush1.bf16.xpose.msra.mxu0 0
    %93 = vmatprep.subr.bf16.mxu0 0
    %94 = vmatpush1.bf16.xpose.msra.mxu0 0
    %95 = vmatprep.mubr.bf16.mxu0 0
    %96 = vmatmul.mubr.bf16.gmra.mrb[0].mxu0 %v58
    %v97 = vpop.f32.mrb[0].mxu0
    %v98 = vadd.f32 0.0, %v97
    %v99 = vpop.f32.mrb[0].mxu0
    %v100 = vpop.f32.mrb[0].mxu0
    %v101 = vpop.f32.mrb[0].mxu0
    %102 = vdwg.mxu0
    %v103 = vadd.f32 %v53, %v98
    %vm104 = vcmask 64512
    %105 = vst.msk [vmem:[#allocation7] sm:$0xff] %vm104, %v103
    // Predicated region
    $region26: #{tpu_custom_call.1} parent=1 // pred_check
      _
    $region27: #{tpu_custom_call.1} parent=1 // pred_check_branch
      %107 = sbr.rel (0) target = $region29
    $region28: #{tpu_custom_call.1} parent=1 // pred_region
      %s109 = ssub.s32 128, 128
      %110 = vsyncadd [#allocation4], %s109
      %s112 = sshll.u32 [#allocation7], 4
      %s113 = int_to_ptr.vmem [resolvable:$true] %s112
      %115 = dma.vmem_to_hbm [thread:$0]  %s113, 128, %s3, [#allocation4]
    $region29: #{tpu_custom_call.1} parent=1 // pred_fallthru
      _
    // Predicated region
    $region30: #{tpu_custom_call.1} parent=1 // pred_check
      _
    $region31: #{tpu_custom_call.1} parent=1 // pred_check_branch
      %117 = sbr.rel (0) target = $region33
    $region32: #{tpu_custom_call.1} parent=1 // pred_region
      %118 = dma.done [#allocation4], 128
    $region33: #{tpu_custom_call.1} parent=1 // pred_fallthru
      _
    %119 = vsyncpa [#allocation3], 1
    %120 = vsyncpa [#allocation6], 1
    %121 = vsyncpa [#allocation4], 1

</llo_original>
